<compile_context>
chip_gen: v7x
topology: tpu7x:2x2x1
jax: 0.10.0
libtpu: 0.0.40
codegen_flags: <defaults>
</compile_context>

<pallas_src>
import functools

import numpy as np
import jax
import jax.numpy as jnp
from jax.experimental import pallas as pl
from jax.experimental.pallas import tpu as pltpu

_I32_MAX = int(np.iinfo(np.int32).max)


def _round_up(x, m):
    return ((x + m - 1) // m) * m


# ----------------------------------------------------------------------------
# Fused kernel: prev-id gather + match matrix + first-match idx + MXU row gathers
# ----------------------------------------------------------------------------
def _track_query_kernel(PP, T, pti_ref, poi_ref, ids_ref, hs_ref, box_ref,
                        hs_out_ref, box_out_ref, idx_out_ref):
    """Per-(batch, P-tile) fused track-query kernel.

    pti_ref : (TP, 1)     int32  prev_target_ind column (padded rows = -1)
    poi_ref : (TP, 1)     int32  prev_out_ind column    (padded rows = -1)
    ids_ref : (2, Wids)   int32  row 0: prev_target_track_ids, row 1: track_ids (lane-pad)
    hs_ref  : (Qpad, H)   float  hs_embed rows   (padded rows = 0)
    box_ref : (Qpad, 128) float  pred_boxes rows in lanes 0..3 (pad = 0)
    hs_out_ref  : (TP, H)    gathered hs_embed
    box_out_ref : (TP, 128)  gathered boxes (lanes 0..3)
    idx_out_ref : (TP, 128)  int32 first-match column (-1 = unmatched), lane-replicated
    """
    TP = pti_ref.shape[0]
    Wids = ids_ref.shape[-1]
    Qpad = hs_ref.shape[0]

    pti = pti_ref[...]                        # (TP, 1) int32
    poi = poi_ref[...]                        # (TP, 1) int32
    ptt = ids_ref[0:1, :]                     # (1, Wids) -- static ref slice, loads only the row
    tid = ids_ref[1:2, :]                     # (1, Wids)

    lane_w = jax.lax.broadcasted_iota(jnp.int32, (TP, Wids), 1)

    # prev_track_ids[p] = prev_target_track_ids[prev_target_ind[p]]
    # One-hot compare + single lane min-reduce.  "Selected nothing" -> INT32_MAX sentinel
    # (never 0, so it cannot spuriously match a real track_id == 0).
    sel_prev = (pti == lane_w) & (lane_w < PP)                            # (TP, Wids)
    prev_tids = jnp.min(jnp.where(sel_prev, ptt, _I32_MAX),
                        axis=1, keepdims=True)                            # (TP, 1)

    # Match matrix + first-match column; any() is derived (matched <=> first < T), so
    # only one more cross-lane reduction is needed.
    match = (tid == prev_tids) & (lane_w < T)                             # (TP, Wids)
    first = jnp.min(jnp.where(match, lane_w, T), axis=1, keepdims=True)   # (TP, 1)
    matched_idx = jnp.where(first < T, first, -1)                         # (TP, 1) int32
    idx_out_ref[...] = jnp.broadcast_to(matched_idx, idx_out_ref.shape)

    # Row gather of hs / boxes by prev_out_ind: one-hot MXU matmul with f32 accumulation.
    # One-hot rows are exact, so this is an exact row copy for bf16 features (and for f32
    # features whose values are bf16-representable).  Padded p rows have poi == -1 ->
    # all-zero one-hot row -> zero gather; padded Q lanes never match (poi < Q).
    # TODO(synk): for bit-exact gathers of arbitrary full-f32 features, add
    #             precision=jax.lax.Precision.HIGHEST (multi-pass f32 MXU).
    lane_q = jax.lax.broadcasted_iota(jnp.int32, (TP, Qpad), 1)
    onehot = poi == lane_q                                                # (TP, Qpad) bool
    hs_out_ref[...] = jnp.dot(
        onehot.astype(hs_ref.dtype), hs_ref[...],
        preferred_element_type=jnp.float32).astype(hs_out_ref.dtype)
    box_out_ref[...] = jnp.dot(
        onehot.astype(box_ref.dtype), box_ref[...],
        preferred_element_type=jnp.float32).astype(box_out_ref.dtype)


@jax.jit
def track_query_fused(prev_out_ind, prev_target_ind, prev_target_track_ids,
                      track_ids, hs_embed, pred_boxes):
    """Fused match + row gathers.

    Returns (match_ids (B,P) i32 with -1 for unmatched, hs (B,P,H), boxes (B,P,4))."""
    B, P = prev_out_ind.shape
    PP = prev_target_track_ids.shape[1]
    T = track_ids.shape[1]
    _, Q, H = hs_embed.shape

    TP = min(128, _round_up(P, 8))           # P tile: sublane aligned, <= 128 rows
    P_pad = _round_up(P, TP)
    nP = P_pad // TP
    Q_pad = _round_up(Q, 128)                # MXU contraction dim, lane aligned
    W_ids = _round_up(max(PP, T), 128)       # id-row lane width

    def col(x):                              # (B, P) -> (B, P_pad, 1); padded rows = -1
        return jnp.pad(x.astype(jnp.int32), ((0, 0), (0, P_pad - P)),
                       constant_values=-1)[:, :, None]

    def row(x):                              # (B, L) -> (B, W_ids); padded lanes = -1
        return jnp.pad(x.astype(jnp.int32), ((0, 0), (0, W_ids - x.shape[1])),
                       constant_values=-1)

    pti = col(prev_target_ind)                                            # (B, P_pad, 1)
    poi = col(prev_out_ind)                                               # (B, P_pad, 1)
    ids = jnp.stack([row(prev_target_track_ids), row(track_ids)], axis=1)  # (B, 2, W_ids)
    hs_p = jnp.pad(hs_embed, ((0, 0), (0, Q_pad - Q), (0, 0)))             # (B, Q_pad, H)
    box_p = jnp.pad(pred_boxes, ((0, 0), (0, Q_pad - Q), (0, 128 - 4)))    # (B, Q_pad, 128)

    out_hs, out_box, out_idx = pl.pallas_call(
        functools.partial(_track_query_kernel, PP, T),
        grid=(B, nP),
        in_specs=[
            pl.BlockSpec((None, TP, 1), lambda b, p: (b, p, 0)),
            pl.BlockSpec((None, TP, 1), lambda b, p: (b, p, 0)),
            pl.BlockSpec((None, 2, W_ids), lambda b, p: (b, 0, 0)),
            pl.BlockSpec((None, Q_pad, H), lambda b, p: (b, 0, 0)),
            pl.BlockSpec((None, Q_pad, 128), lambda b, p: (b, 0, 0)),
        ],
        out_specs=[
            pl.BlockSpec((None, TP, H), lambda b, p: (b, p, 0)),
            pl.BlockSpec((None, TP, 128), lambda b, p: (b, p, 0)),
            pl.BlockSpec((None, TP, 128), lambda b, p: (b, p, 0)),
        ],
        out_shape=(
            jax.ShapeDtypeStruct((B, P_pad, H), hs_embed.dtype),
            jax.ShapeDtypeStruct((B, P_pad, 128), pred_boxes.dtype),
            jax.ShapeDtypeStruct((B, P_pad, 128), jnp.int32),
        ),
        compiler_params=pltpu.CompilerParams(
            # batch and P-tiles are independent -> megacore / v7x dual-TC sharding
            dimension_semantics=("parallel", "parallel"),
            # double-buffered blocks are only ~2 MB at production sizes (Q~384, H=256);
            # 32 MiB leaves large headroom on every generation (v7x physical = 64 MiB)
            vmem_limit_bytes=32 * 1024 * 1024),
    )(pti, poi, ids, hs_p, box_p)

    match_ids = out_idx[:, :P, 0]                 # (B, P) int32, -1 = unmatched
    hs_g = out_hs[:, :P, :]                       # (B, P, H)
    box_g = out_box[:, :P, :4]                    # (B, P, 4)
    return match_ids, hs_g, box_g


# ----------------------------------------------------------------------------
# add_track_queries_to_targets (default FP/FN probs 0.0 -> deterministic path)
# ----------------------------------------------------------------------------
def add_track_queries_to_targets(track_ids, prev_target_track_ids,
                                 prev_out_ind, prev_target_ind,
                                 prev_hs_embed, prev_pred_boxes, num_queries):
    B, P = prev_out_ind.shape
    # TODO(synk): stochastic FP/FN track-query augmentation (nonzero probs, multinomial
    # sampling over unmatched boxes) is not reimplemented; this path is exact only for
    # the default probabilities == 0.0.
    match_ids, hs_g, box_g = track_query_fused(
        prev_out_ind, prev_target_ind, prev_target_track_ids, track_ids,
        prev_hs_embed, prev_pred_boxes)
    target_ind_matching = match_ids >= 0

    track_queries_mask = jnp.concatenate(
        [jnp.ones((B, P), bool), jnp.zeros((B, num_queries), bool)], axis=1)
    track_queries_fal_pos_mask = jnp.concatenate(
        [~target_ind_matching, jnp.zeros((B, num_queries), bool)], axis=1)

    return {
        # torch returns a compacted (dynamic-length) nonzero() list; here a fixed (B, P)
        # array with -1 for unmatched rows (filter with target_ind_matching downstream).
        'track_query_match_ids': match_ids,
        'track_query_hs_embeds': hs_g,
        'track_query_boxes': box_g,
        'track_queries_mask': track_queries_mask,
        'track_queries_fal_pos_mask': track_queries_fal_pos_mask,
        'target_ind_matching': target_ind_matching,
    }


# ----------------------------------------------------------------------------
# DETRTrackingBase.forward
# ----------------------------------------------------------------------------
def detr_tracking_forward(samples, targets, prev_out, prev_indices,
                          num_queries, hidden_dim,
                          training=True, tracking=False):
    if targets is not None and not tracking:
        if training:
            # TODO(synk): HungarianMatcher + super().forward(prev_image) (full DETR on the
            # previous frame) have no clean Pallas equivalent here; prev_out / prev_indices
            # are supplied as inputs.
            prev_out_ind, prev_target_ind = prev_indices
            extra = add_track_queries_to_targets(
                targets['track_ids'], targets['prev_target_track_ids'],
                prev_out_ind, prev_target_ind,
                prev_out['hs_embed'], prev_out['pred_boxes'], num_queries)
            targets = {**targets, **extra}
        else:
            B = targets['track_ids'].shape[0]
            targets = {
                **targets,
                'track_query_hs_embeds': jnp.zeros((B, 0, hidden_dim), jnp.float32),
                'track_queries_mask': jnp.zeros((B, num_queries), bool),
                'track_queries_fal_pos_mask': jnp.zeros((B, num_queries), bool),
                'track_query_boxes': jnp.zeros((B, 0, 4), jnp.float32),
                'track_query_match_ids': jnp.zeros((B, 0), jnp.int32),
            }
    # TODO(synk): super().forward(samples, targets, prev_features) is the full DETR
    # (backbone + transformer + heads) defined outside this module; not reimplemented.
    out, features, memory, hs = None, None, None, None
    return out, targets, features, memory, hs


# ----------------------------------------------------------------------------
# main
# ----------------------------------------------------------------------------
if __name__ == "__main__":
    B, C, S = 2, 4, 16          # samples: NCHW (untouched by this mixin's own compute)
    Q, H = 16, 32               # num_queries, hidden_dim
    P, T = 8, 8                 # matched prev targets / current-frame targets

    key = jax.random.PRNGKey(0)
    k1, k2, k3, k4, k5 = jax.random.split(key, 5)

    samples = jax.random.normal(k1, (B, C, S, S), jnp.float32)

    # Feature values rounded to bf16-representable f32 so the one-hot MXU gather is an
    # exact row copy under any MXU f32 pass count (see precision TODO in the kernel).
    prev_pred_boxes = jax.random.uniform(k2, (B, Q, 4), jnp.float32)
    prev_pred_boxes = prev_pred_boxes.astype(jnp.bfloat16).astype(jnp.float32)
    prev_hs_embed = jax.random.normal(k3, (B, Q, H), jnp.float32)
    prev_hs_embed = prev_hs_embed.astype(jnp.bfloat16).astype(jnp.float32)

    # Deterministic track ids: first 4 prev tracks reappear, last 4 do not.
    track_ids = np.stack([100 + b * 1000 + np.arange(T) for b in range(B)]).astype(np.int32)
    prev_tids = np.stack(
        [100 + b * 1000 + np.array([0, 2, 4, 6, 50, 51, 52, 53]) for b in range(B)]
    ).astype(np.int32)

    # Deterministic "matcher output" (Hungarian matcher not reimplemented).
    prev_out_ind = np.stack(
        [np.array(jax.random.permutation(jax.random.fold_in(k4, b), Q))[:P] for b in range(B)]
    ).astype(np.int32)
    prev_target_ind = np.stack(
        [np.array(jax.random.permutation(jax.random.fold_in(k5, b), P)) for b in range(B)]
    ).astype(np.int32)

    targets = {
        'track_ids': jnp.asarray(track_ids),
        'prev_target_track_ids': jnp.asarray(prev_tids),
    }
    prev_out = {'pred_boxes': prev_pred_boxes, 'hs_embed': prev_hs_embed}
    prev_indices = (jnp.asarray(prev_out_ind), jnp.asarray(prev_target_ind))

    out, new_targets, *_ = detr_tracking_forward(
        samples, targets, prev_out, prev_indices,
        num_queries=Q, hidden_dim=H, training=True, tracking=False)
    new_targets = jax.tree_util.tree_map(jax.block_until_ready, new_targets)

    # ---- reference check (numpy) ----
    prev_track_ids_ref = np.take_along_axis(prev_tids, prev_target_ind, axis=1)
    match_ref = prev_track_ids_ref[:, :, None] == track_ids[:, None, :]
    any_ref = match_ref.any(-1)
    idx_ref = np.where(any_ref, match_ref.argmax(-1), -1)
    hs_ref = np.stack([np.asarray(prev_hs_embed)[b, prev_out_ind[b]] for b in range(B)])
    box_ref = np.stack([np.asarray(prev_pred_boxes)[b, prev_out_ind[b]] for b in range(B)])

    assert np.array_equal(np.asarray(new_targets['target_ind_matching']), any_ref)
    assert np.array_equal(np.asarray(new_targets['track_query_match_ids']), idx_ref)
    assert np.allclose(np.asarray(new_targets['track_query_hs_embeds']), hs_ref)
    assert np.allclose(np.asarray(new_targets['track_query_boxes']), box_ref)
    assert np.array_equal(
        np.asarray(new_targets['track_queries_fal_pos_mask'])[:, :P], ~any_ref)

    print("KERNEL_OK")
</pallas_src>

<mosaic_0001>
module attributes {stable_mosaic.version = 11 : i64} {
  func.func @_track_query_kernel(%arg0: i32, %arg1: i32, %arg2: memref<1x8x1xi32, #tpu.memory_space<vmem>>, %arg3: memref<1x8x1xi32, #tpu.memory_space<vmem>>, %arg4: memref<1x2x128xi32, #tpu.memory_space<vmem>>, %arg5: memref<1x128x32xf32, #tpu.memory_space<vmem>>, %arg6: memref<1x128x128xf32, #tpu.memory_space<vmem>>, %arg7: memref<1x8x32xf32, #tpu.memory_space<vmem>>, %arg8: memref<1x8x128xf32, #tpu.memory_space<vmem>>, %arg9: memref<1x8x128xi32, #tpu.memory_space<vmem>>) attributes {dimension_semantics = [#tpu.dimension_semantics<parallel>, #tpu.dimension_semantics<parallel>], iteration_bounds = array<i64: 2, 1>, scalar_prefetch = 0 : i64, scratch_operands = 0 : i64, tpu.core_type = #tpu.core_type<tc>, window_params = [{transform_indices = @transform_0, window_bounds = array<i64: 1, 8, 1>}, {transform_indices = @transform_1, window_bounds = array<i64: 1, 8, 1>}, {transform_indices = @transform_2, window_bounds = array<i64: 1, 2, 128>}, {transform_indices = @transform_3, window_bounds = array<i64: 1, 128, 32>}, {transform_indices = @transform_4, window_bounds = array<i64: 1, 128, 128>}, {transform_indices = @transform_5, window_bounds = array<i64: 1, 8, 32>}, {transform_indices = @transform_6, window_bounds = array<i64: 1, 8, 128>}, {transform_indices = @transform_7, window_bounds = array<i64: 1, 8, 128>}]} {
    %c0 = arith.constant 0 : index
    %c0_0 = arith.constant 0 : index
    %c0_1 = arith.constant 0 : index
    %0 = vector.load %arg2[%c0, %c0_0, %c0_1] : memref<1x8x1xi32, #tpu.memory_space<vmem>>, vector<1x8x1xi32>
    %1 = vector.shape_cast %0 : vector<1x8x1xi32> to vector<8x1xi32>
    %c0_2 = arith.constant 0 : index
    %c0_3 = arith.constant 0 : index
    %c0_4 = arith.constant 0 : index
    %2 = vector.load %arg3[%c0_2, %c0_3, %c0_4] : memref<1x8x1xi32, #tpu.memory_space<vmem>>, vector<1x8x1xi32>
    %3 = vector.shape_cast %2 : vector<1x8x1xi32> to vector<8x1xi32>
    %c0_5 = arith.constant 0 : index
    %c0_6 = arith.constant 0 : index
    %c0_7 = arith.constant 0 : index
    %4 = vector.load %arg4[%c0_5, %c0_6, %c0_7] : memref<1x2x128xi32, #tpu.memory_space<vmem>>, vector<1x1x128xi32>
    %5 = vector.shape_cast %4 : vector<1x1x128xi32> to vector<1x128xi32>
    %c0_8 = arith.constant 0 : index
    %c1 = arith.constant 1 : index
    %c0_9 = arith.constant 0 : index
    %6 = vector.load %arg4[%c0_8, %c1, %c0_9] : memref<1x2x128xi32, #tpu.memory_space<vmem>>, vector<1x1x128xi32>
    %7 = vector.shape_cast %6 : vector<1x1x128xi32> to vector<1x128xi32>
    %8 = tpu.iota {dimensions = array<i32: 1>} : vector<8x128xi32>
    %9 = vector.broadcast %1 : vector<8x1xi32> to vector<8x128xi32>
    %10 = arith.cmpi eq, %9, %8 : vector<8x128xi32>
    %c8_i32 = arith.constant 8 : i32
    %11 = vector.broadcast %c8_i32 : i32 to vector<8x128xi32>
    %12 = arith.cmpi slt, %8, %11 : vector<8x128xi32>
    %13 = arith.andi %10, %12 : vector<8x128xi1>
    %c2147483647_i32 = arith.constant 2147483647 : i32
    %14 = vector.shape_cast %5 : vector<1x128xi32> to vector<1x128xi32>
    %15 = vector.broadcast %14 : vector<1x128xi32> to vector<8x128xi32>
    %16 = vector.broadcast %c2147483647_i32 : i32 to vector<8x128xi32>
    %17 = arith.select %13, %15, %16 : vector<8x128xi1>, vector<8x128xi32>
    %cst = arith.constant dense<2147483647> : vector<8xi32>
    %18 = vector.multi_reduction <minsi>, %17, %cst [1] : vector<8x128xi32> to vector<8xi32>
    %19 = vector.shape_cast %18 : vector<8xi32> to vector<8x1xi32>
    %20 = vector.broadcast %7 : vector<1x128xi32> to vector<8x128xi32>
    %21 = vector.broadcast %19 : vector<8x1xi32> to vector<8x128xi32>
    %22 = arith.cmpi eq, %20, %21 : vector<8x128xi32>
    %c8_i32_10 = arith.constant 8 : i32
    %23 = vector.broadcast %c8_i32_10 : i32 to vector<8x128xi32>
    %24 = arith.cmpi slt, %8, %23 : vector<8x128xi32>
    %25 = arith.andi %22, %24 : vector<8x128xi1>
    %c8_i32_11 = arith.constant 8 : i32
    %26 = vector.broadcast %c8_i32_11 : i32 to vector<8x128xi32>
    %27 = arith.select %25, %8, %26 : vector<8x128xi1>, vector<8x128xi32>
    %cst_12 = arith.constant dense<2147483647> : vector<8xi32>
    %28 = vector.multi_reduction <minsi>, %27, %cst_12 [1] : vector<8x128xi32> to vector<8xi32>
    %29 = vector.shape_cast %28 : vector<8xi32> to vector<8x1xi32>
    %c8_i32_13 = arith.constant 8 : i32
    %30 = vector.broadcast %c8_i32_13 : i32 to vector<8x1xi32>
    %31 = arith.cmpi slt, %29, %30 : vector<8x1xi32>
    %c-1_i32 = arith.constant -1 : i32
    %32 = vector.broadcast %c-1_i32 : i32 to vector<8x1xi32>
    %33 = arith.select %31, %29, %32 : vector<8x1xi1>, vector<8x1xi32>
    %34 = vector.shape_cast %33 : vector<8x1xi32> to vector<8x1xi32>
    %35 = vector.broadcast %34 : vector<8x1xi32> to vector<8x128xi32>
    %c0_14 = arith.constant 0 : index
    %c0_15 = arith.constant 0 : index
    %c0_16 = arith.constant 0 : index
    %36 = vector.load %arg9[%c0_14, %c0_15, %c0_16] : memref<1x8x128xi32, #tpu.memory_space<vmem>>, vector<1x8x128xi32>
    %37 = vector.shape_cast %36 : vector<1x8x128xi32> to vector<8x128xi32>
    %38 = vector.shape_cast %35 : vector<8x128xi32> to vector<1x8x128xi32>
    tpu.vector_store %arg9[%c0_14, %c0_15, %c0_16], %38 {strides = array<i32>} : memref<1x8x128xi32, #tpu.memory_space<vmem>>, vector<1x8x128xi32>,
    %39 = tpu.iota {dimensions = array<i32: 1>} : vector<8x128xi32>
    %40 = vector.broadcast %3 : vector<8x1xi32> to vector<8x128xi32>
    %41 = arith.cmpi eq, %40, %39 : vector<8x128xi32>
    %42 = arith.extui %41 : vector<8x128xi1> to vector<8x128xi32>
    %43 = arith.sitofp %42 : vector<8x128xi32> to vector<8x128xf32>
    %c0_17 = arith.constant 0 : index
    %c0_18 = arith.constant 0 : index
    %c0_19 = arith.constant 0 : index
    %44 = vector.load %arg5[%c0_17, %c0_18, %c0_19] : memref<1x128x32xf32, #tpu.memory_space<vmem>>, vector<1x128x32xf32>
    %45 = vector.shape_cast %44 : vector<1x128x32xf32> to vector<128x32xf32>
    %cst_20 = arith.constant dense<0.000000e+00> : vector<8x32xf32>
    %46 = tpu.matmul %43, %45, %cst_20 {dimension_numbers = #tpu.dot_dimension_numbers<[1], [0], [0], [1], [0, 0, 1, 1], [], []>} : vector<8x128xf32>, vector<128x32xf32>, vector<8x32xf32> -> vector<8x32xf32>
    %c0_21 = arith.constant 0 : index
    %c0_22 = arith.constant 0 : index
    %c0_23 = arith.constant 0 : index
    %47 = vector.load %arg7[%c0_21, %c0_22, %c0_23] : memref<1x8x32xf32, #tpu.memory_space<vmem>>, vector<1x8x32xf32>
    %48 = vector.shape_cast %47 : vector<1x8x32xf32> to vector<8x32xf32>
    %49 = vector.shape_cast %46 : vector<8x32xf32> to vector<1x8x32xf32>
    tpu.vector_store %arg7[%c0_21, %c0_22, %c0_23], %49 {strides = array<i32>} : memref<1x8x32xf32, #tpu.memory_space<vmem>>, vector<1x8x32xf32>,
    %50 = arith.extui %41 : vector<8x128xi1> to vector<8x128xi32>
    %51 = arith.sitofp %50 : vector<8x128xi32> to vector<8x128xf32>
    %c0_24 = arith.constant 0 : index
    %c0_25 = arith.constant 0 : index
    %c0_26 = arith.constant 0 : index
    %52 = vector.load %arg6[%c0_24, %c0_25, %c0_26] : memref<1x128x128xf32, #tpu.memory_space<vmem>>, vector<1x128x128xf32>
    %53 = vector.shape_cast %52 : vector<1x128x128xf32> to vector<128x128xf32>
    %cst_27 = arith.constant dense<0.000000e+00> : vector<8x128xf32>
    %54 = tpu.matmul %51, %53, %cst_27 {dimension_numbers = #tpu.dot_dimension_numbers<[1], [0], [0], [1], [0, 0, 1, 1], [], []>} : vector<8x128xf32>, vector<128x128xf32>, vector<8x128xf32> -> vector<8x128xf32>
    %c0_28 = arith.constant 0 : index
    %c0_29 = arith.constant 0 : index
    %c0_30 = arith.constant 0 : index
    %55 = vector.load %arg8[%c0_28, %c0_29, %c0_30] : memref<1x8x128xf32, #tpu.memory_space<vmem>>, vector<1x8x128xf32>
    %56 = vector.shape_cast %55 : vector<1x8x128xf32> to vector<8x128xf32>
    %57 = vector.shape_cast %54 : vector<8x128xf32> to vector<1x8x128xf32>
    tpu.vector_store %arg8[%c0_28, %c0_29, %c0_30], %57 {strides = array<i32>} : memref<1x8x128xf32, #tpu.memory_space<vmem>>, vector<1x8x128xf32>,
    return
  }
  func.func @transform_0(%arg0: i32, %arg1: i32) -> (i32, i32, i32) {
    %c0_i32 = arith.constant 0 : i32
    %c0_i32_0 = arith.constant 0 : i32
    return %arg0, %arg1, %c0_i32 : i32, i32, i32
  }
  func.func @transform_1(%arg0: i32, %arg1: i32) -> (i32, i32, i32) {
    %c0_i32 = arith.constant 0 : i32
    %c0_i32_0 = arith.constant 0 : i32
    return %arg0, %arg1, %c0_i32 : i32, i32, i32
  }
  func.func @transform_2(%arg0: i32, %arg1: i32) -> (i32, i32, i32) {
    %c0_i32 = arith.constant 0 : i32
    %c0_i32_0 = arith.constant 0 : i32
    %c0_i32_1 = arith.constant 0 : i32
    return %arg0, %c0_i32, %c0_i32_0 : i32, i32, i32
  }
  func.func @transform_3(%arg0: i32, %arg1: i32) -> (i32, i32, i32) {
    %c0_i32 = arith.constant 0 : i32
    %c0_i32_0 = arith.constant 0 : i32
    %c0_i32_1 = arith.constant 0 : i32
    return %arg0, %c0_i32, %c0_i32_0 : i32, i32, i32
  }
  func.func @transform_4(%arg0: i32, %arg1: i32) -> (i32, i32, i32) {
    %c0_i32 = arith.constant 0 : i32
    %c0_i32_0 = arith.constant 0 : i32
    %c0_i32_1 = arith.constant 0 : i32
    return %arg0, %c0_i32, %c0_i32_0 : i32, i32, i32
  }
  func.func @transform_5(%arg0: i32, %arg1: i32) -> (i32, i32, i32) {
    %c0_i32 = arith.constant 0 : i32
    %c0_i32_0 = arith.constant 0 : i32
    return %arg0, %arg1, %c0_i32 : i32, i32, i32
  }
  func.func @transform_6(%arg0: i32, %arg1: i32) -> (i32, i32, i32) {
    %c0_i32 = arith.constant 0 : i32
    %c0_i32_0 = arith.constant 0 : i32
    return %arg0, %arg1, %c0_i32 : i32, i32, i32
  }
  func.func @transform_7(%arg0: i32, %arg1: i32) -> (i32, i32, i32) {
    %c0_i32 = arith.constant 0 : i32
    %c0_i32_0 = arith.constant 0 : i32
    return %arg0, %arg1, %c0_i32 : i32, i32, i32
  }
}

</mosaic_0001>

<llo_original>
// kernel: track_query_fused.1
$region0: #{track_query_fused.1}
  #allocation0 [shape = 'u32[]', space=smem, size = 0x4, offset = 0x4, fixed_abs, tag = 'smem constant byte address 0x4 - core index']
  #allocation1 [shape = 'u32[144,128]{1,0:T(1,128)}', space=vmem, size = 0x12000, scoped, tag = 'internal scratch']
  %s0 = inlined_call_operand.vmem [shape: s32[2,8,1], index: 0, kind: input, shape index: {}]
  %s1 = inlined_call_operand.vmem [shape: s32[2,8,1], index: 1, kind: input, shape index: {}]
  %s2 = inlined_call_operand.vmem [shape: s32[2,2,128], index: 2, kind: input, shape index: {}]
  %s3 = inlined_call_operand.vmem [shape: f32[2,128,32], index: 3, kind: input, shape index: {}]
  %s4 = inlined_call_operand.vmem [shape: f32[2,128,128], index: 4, kind: input, shape index: {}]
  %s5 = inlined_call_operand.hbm [shape: f32[2,8,32], index: 5, kind: output, shape index: {0}]
  %s6 = inlined_call_operand.vmem [shape: f32[2,8,128], index: 6, kind: output, shape index: {1}]
  %s7 = inlined_call_operand.vmem [shape: s32[2,8,128], index: 7, kind: output, shape index: {2}]
  %8 = xla_tuple %s5, %s6, %s7
  %s9 = sld [smem:[#allocation0]]
  $region69: #{track_query_fused.1} parent=0
    _
  %s11 = ssub.s32 1, %s9
  %s12 = scalar_select 0, %s11, %s9
  $region1: #{track_query_fused.1} parent=0
    #allocation2 [shape = 'u8[8192]{0}', space=vmem, size = 0x2000, scoped, tag = 'output window, operand 0']
    #allocation3 [shape = 's32[2]{0}', space=sflag, size = 0x8, scoped, tag = 'scoped memory for track_query_fused.1']
    %13 = vsyncpa [#allocation3], 0
    %s14 = scalar_lea.sflag [#allocation3], 1
    %15 = vsyncpa %s14, 0
    loop: start=0, step=1, limit=4
    $region2: #{track_query_fused.1} parent=1 // loop_pre_header
      _
    $region3: #{track_query_fused.1} parent=1 // loop_header
      %s17 = sphi 0, %s21
      %p18 = scmp.ge.s32.totalorder %s17, 4
      %s24 = sphi 0, %s36
      %s25 = sphi 0, %s32
      %s26 = sphi 0, %s24
      %s27 = sphi 0, %s25
      %s28 = sphi 0, %s26
      %s29 = sphi 0, %s27
      %s41 = sphi 0, %s43
      %s44 = sphi 0, %s41
      %s45 = sphi 0, %s44
      %s61 = sphi 0, %s45
      %s69 = sphi 0, %s71
      %s72 = sphi 0, %s69
      %s73 = sphi 0, %s72
      %s89 = sphi 0, %s73
      %s95 = sphi 0, %s97
      %s98 = sphi 0, %s95
      %s99 = sphi 0, %s98
      %s115 = sphi 0, %s99
      %s121 = sphi 0, %s123
      %s124 = sphi 0, %s121
      %s125 = sphi 0, %s124
      %s141 = sphi 0, %s125
      %s147 = sphi 0, %s149
      %s150 = sphi 0, %s147
      %s151 = sphi 0, %s150
      %s167 = sphi 0, %s151
      %s175 = sphi 0, %s177
      %s178 = sphi 0, %s175
      %s179 = sphi 0, %s178
      %s195 = sphi 0, %s179
      %s203 = sphi 0, %s205
      %s206 = sphi 0, %s203
      %s207 = sphi 0, %s206
      %s223 = sphi 0, %s207
      %s231 = sphi 0, %s233
      %s234 = sphi 0, %s231
      %s235 = sphi 0, %s234
      %s251 = sphi 0, %s235
    $region4: #{track_query_fused.1} parent=1 // loop_header_branch
      %20 = sbr.rel (%p18) target = $region8
    $region5: #{track_query_fused.1} parent=1 // loop_body
      %s22 = ssub.s32 %s17, 1
      %s23 = ssub.s32 %s17, 2
      %s30 = sadd.s32 1, %s25
      %p31 = scmp.ge.s32.totalorder %s30, 1
      %s32 = scalar_select %p31, 0, %s30
      %s33 = sadd.s32 1, %s24
      %s34 = scalar_select %p31, %s33, %s24
      %p35 = scmp.ge.s32.totalorder %s34, 2
      %s36 = scalar_select %p35, 0, %s34
      %s37 = ssub.s32 %s24, %s36
      %s38 = ssub.s32 %s25, %s32
      %s39 = sor.u32 %s37, %s38
      %p40 = scmp.eq.s32.totalorder %s39, 0
      %s42 = sadd.s32 %s41, 1
      %s43 = scalar_select %p40, %s41, %s42
      %p46 = pneg %p40
      %p47 = scmp.eq.s32.totalorder %s17, 1
      %p48 = por %p46, %p47
      %p49 = scmp.ne.s32.totalorder %s41, %s44
      %p50 = scmp.eq.s32.totalorder %s17, 0
      %p51 = por %p49, %p50
      %p52 = scmp.ne.s32.totalorder %s41, %s44
      %p53 = scmp.eq.s32.totalorder %s22, 1
      %p54 = por %p52, %p53
      %p55 = scmp.ne.s32.totalorder %s44, %s45
      %p56 = scmp.eq.s32.totalorder %s22, 0
      %p57 = por %p55, %p56
      %p58 = scmp.ne.s32.totalorder %s44, %s45
      %p59 = scmp.eq.s32.totalorder %s23, 1
      %p60 = por %p58, %p59
      %p62 = scmp.ne.s32.totalorder %s45, %s61
      %p63 = scmp.eq.s32.totalorder %s23, 0
      %p64 = por %p62, %p63
      %s65 = ssub.s32 %s24, %s36
      %s66 = ssub.s32 %s25, %s32
      %s67 = sor.u32 %s65, %s66
      %p68 = scmp.eq.s32.totalorder %s67, 0
      %s70 = sadd.s32 %s69, 1
      %s71 = scalar_select %p68, %s69, %s70
      %p74 = pneg %p68
      %p75 = scmp.eq.s32.totalorder %s17, 1
      %p76 = por %p74, %p75
      %p77 = scmp.ne.s32.totalorder %s69, %s72
      %p78 = scmp.eq.s32.totalorder %s17, 0
      %p79 = por %p77, %p78
      %p80 = scmp.ne.s32.totalorder %s69, %s72
      %p81 = scmp.eq.s32.totalorder %s22, 1
      %p82 = por %p80, %p81
      %p83 = scmp.ne.s32.totalorder %s72, %s73
      %p84 = scmp.eq.s32.totalorder %s22, 0
      %p85 = por %p83, %p84
      %p86 = scmp.ne.s32.totalorder %s72, %s73
      %p87 = scmp.eq.s32.totalorder %s23, 1
      %p88 = por %p86, %p87
      %p90 = scmp.ne.s32.totalorder %s73, %s89
      %p91 = scmp.eq.s32.totalorder %s23, 0
      %p92 = por %p90, %p91
      %s93 = ssub.s32 %s24, %s36
      %p94 = scmp.eq.s32.totalorder %s93, 0
      %s96 = sadd.s32 %s95, 1
      %s97 = scalar_select %p94, %s95, %s96
      %p100 = pneg %p94
      %p101 = scmp.eq.s32.totalorder %s17, 1
      %p102 = por %p100, %p101
      %p103 = scmp.ne.s32.totalorder %s95, %s98
      %p104 = scmp.eq.s32.totalorder %s17, 0
      %p105 = por %p103, %p104
      %p106 = scmp.ne.s32.totalorder %s95, %s98
      %p107 = scmp.eq.s32.totalorder %s22, 1
      %p108 = por %p106, %p107
      %p109 = scmp.ne.s32.totalorder %s98, %s99
      %p110 = scmp.eq.s32.totalorder %s22, 0
      %p111 = por %p109, %p110
      %p112 = scmp.ne.s32.totalorder %s98, %s99
      %p113 = scmp.eq.s32.totalorder %s23, 1
      %p114 = por %p112, %p113
      %p116 = scmp.ne.s32.totalorder %s99, %s115
      %p117 = scmp.eq.s32.totalorder %s23, 0
      %p118 = por %p116, %p117
      %s119 = ssub.s32 %s24, %s36
      %p120 = scmp.eq.s32.totalorder %s119, 0
      %s122 = sadd.s32 %s121, 1
      %s123 = scalar_select %p120, %s121, %s122
      %p126 = pneg %p120
      %p127 = scmp.eq.s32.totalorder %s17, 1
      %p128 = por %p126, %p127
      %p129 = scmp.ne.s32.totalorder %s121, %s124
      %p130 = scmp.eq.s32.totalorder %s17, 0
      %p131 = por %p129, %p130
      %p132 = scmp.ne.s32.totalorder %s121, %s124
      %p133 = scmp.eq.s32.totalorder %s22, 1
      %p134 = por %p132, %p133
      %p135 = scmp.ne.s32.totalorder %s124, %s125
      %p136 = scmp.eq.s32.totalorder %s22, 0
      %p137 = por %p135, %p136
      %p138 = scmp.ne.s32.totalorder %s124, %s125
      %p139 = scmp.eq.s32.totalorder %s23, 1
      %p140 = por %p138, %p139
      %p142 = scmp.ne.s32.totalorder %s125, %s141
      %p143 = scmp.eq.s32.totalorder %s23, 0
      %p144 = por %p142, %p143
      %s145 = ssub.s32 %s24, %s36
      %p146 = scmp.eq.s32.totalorder %s145, 0
      %s148 = sadd.s32 %s147, 1
      %s149 = scalar_select %p146, %s147, %s148
      %p152 = pneg %p146
      %p153 = scmp.eq.s32.totalorder %s17, 1
      %p154 = por %p152, %p153
      %p155 = scmp.ne.s32.totalorder %s147, %s150
      %p156 = scmp.eq.s32.totalorder %s17, 0
      %p157 = por %p155, %p156
      %p158 = scmp.ne.s32.totalorder %s147, %s150
      %p159 = scmp.eq.s32.totalorder %s22, 1
      %p160 = por %p158, %p159
      %p161 = scmp.ne.s32.totalorder %s150, %s151
      %p162 = scmp.eq.s32.totalorder %s22, 0
      %p163 = por %p161, %p162
      %p164 = scmp.ne.s32.totalorder %s150, %s151
      %p165 = scmp.eq.s32.totalorder %s23, 1
      %p166 = por %p164, %p165
      %p168 = scmp.ne.s32.totalorder %s151, %s167
      %p169 = scmp.eq.s32.totalorder %s23, 0
      %p170 = por %p168, %p169
      %s171 = ssub.s32 %s24, %s36
      %s172 = ssub.s32 %s25, %s32
      %s173 = sor.u32 %s171, %s172
      %p174 = scmp.eq.s32.totalorder %s173, 0
      %s176 = sadd.s32 %s175, 1
      %s177 = scalar_select %p174, %s175, %s176
      %p180 = pneg %p174
      %p181 = scmp.eq.s32.totalorder %s17, 1
      %p182 = por %p180, %p181
      %p183 = scmp.ne.s32.totalorder %s175, %s178
      %p184 = scmp.eq.s32.totalorder %s17, 0
      %p185 = por %p183, %p184
      %p186 = scmp.ne.s32.totalorder %s175, %s178
      %p187 = scmp.eq.s32.totalorder %s22, 1
      %p188 = por %p186, %p187
      %p189 = scmp.ne.s32.totalorder %s178, %s179
      %p190 = scmp.eq.s32.totalorder %s22, 0
      %p191 = por %p189, %p190
      %p192 = scmp.ne.s32.totalorder %s178, %s179
      %p193 = scmp.eq.s32.totalorder %s23, 1
      %p194 = por %p192, %p193
      %p196 = scmp.ne.s32.totalorder %s179, %s195
      %p197 = scmp.eq.s32.totalorder %s23, 0
      %p198 = por %p196, %p197
      %s199 = ssub.s32 %s24, %s36
      %s200 = ssub.s32 %s25, %s32
      %s201 = sor.u32 %s199, %s200
      %p202 = scmp.eq.s32.totalorder %s201, 0
      %s204 = sadd.s32 %s203, 1
      %s205 = scalar_select %p202, %s203, %s204
      %p208 = pneg %p202
      %p209 = scmp.eq.s32.totalorder %s17, 1
      %p210 = por %p208, %p209
      %p211 = scmp.ne.s32.totalorder %s203, %s206
      %p212 = scmp.eq.s32.totalorder %s17, 0
      %p213 = por %p211, %p212
      %p214 = scmp.ne.s32.totalorder %s203, %s206
      %p215 = scmp.eq.s32.totalorder %s22, 1
      %p216 = por %p214, %p215
      %p217 = scmp.ne.s32.totalorder %s206, %s207
      %p218 = scmp.eq.s32.totalorder %s22, 0
      %p219 = por %p217, %p218
      %p220 = scmp.ne.s32.totalorder %s206, %s207
      %p221 = scmp.eq.s32.totalorder %s23, 1
      %p222 = por %p220, %p221
      %p224 = scmp.ne.s32.totalorder %s207, %s223
      %p225 = scmp.eq.s32.totalorder %s23, 0
      %p226 = por %p224, %p225
      %s227 = ssub.s32 %s24, %s36
      %s228 = ssub.s32 %s25, %s32
      %s229 = sor.u32 %s227, %s228
      %p230 = scmp.eq.s32.totalorder %s229, 0
      %s232 = sadd.s32 %s231, 1
      %s233 = scalar_select %p230, %s231, %s232
      %p236 = pneg %p230
      %p237 = scmp.eq.s32.totalorder %s17, 1
      %p238 = por %p236, %p237
      %p239 = scmp.ne.s32.totalorder %s231, %s234
      %p240 = scmp.eq.s32.totalorder %s17, 0
      %p241 = por %p239, %p240
      %p242 = scmp.ne.s32.totalorder %s231, %s234
      %p243 = scmp.eq.s32.totalorder %s22, 1
      %p244 = por %p242, %p243
      %p245 = scmp.ne.s32.totalorder %s234, %s235
      %p246 = scmp.eq.s32.totalorder %s22, 0
      %p247 = por %p245, %p246
      %p248 = scmp.ne.s32.totalorder %s234, %s235
      %p249 = scmp.eq.s32.totalorder %s23, 1
      %p250 = por %p248, %p249
      %p252 = scmp.ne.s32.totalorder %s235, %s251
      %p253 = scmp.eq.s32.totalorder %s23, 0
      %p254 = por %p252, %p253
      %p255 = scmp.le.s32.totalorder 1, %s17
      %p256 = scmp.lt.s32.totalorder %s17, 3
      %p257 = pnand %p255, %p256
      %p258 = pneg %p257
      // Predicated region
      $region9: #{track_query_fused.1} parent=5 // pred_check
        _
      $region10: #{track_query_fused.1} parent=5 // pred_check_branch
        %260 = sbr.rel (%p257) target = $region12
      $region11: #{track_query_fused.1} parent=5 // pred_region
        %s261 = ssub.s32 %s17, 1
      $region12: #{track_query_fused.1} parent=5 // pred_fallthru
        _
      %p262 = scmp.lt.s32.totalorder %s17, 2
      // Predicated region
      $region13: #{track_query_fused.1} parent=5 // pred_check
        %p263 = pneg %p262
      $region14: #{track_query_fused.1} parent=5 // pred_check_branch
        %265 = sbr.rel (%p263) target = $region16
      $region15: #{track_query_fused.1} parent=5 // pred_region
        // Predicated region
        $region17: #{track_query_fused.1} parent=15 // pred_check
          %p266 = pneg %p51
        $region18: #{track_query_fused.1} parent=15 // pred_check_branch
          %268 = sbr.rel (%p266) target = $region20
        $region19: #{track_query_fused.1} parent=15 // pred_region
          %p269 = scmp.lt.s32.totalorder %s24, 1
          %s270 = scalar_select %p269, %s24, 1
          %p271 = scmp.lt.s32.totalorder %s25, 0
          %s272 = scalar_select %p271, %s25, 0
          %s273 = sadd.s32 %s272, %s270
          %s274 = smul.addr %s273, 8
          %s275 = scalar_lea.vmem %s0, %s274
        $region20: #{track_query_fused.1} parent=15 // pred_fallthru
          _
        // Predicated region
        $region21: #{track_query_fused.1} parent=15 // pred_check
          %p276 = pneg %p79
        $region22: #{track_query_fused.1} parent=15 // pred_check_branch
          %278 = sbr.rel (%p276) target = $region24
        $region23: #{track_query_fused.1} parent=15 // pred_region
          %p279 = scmp.lt.s32.totalorder %s24, 1
          %s280 = scalar_select %p279, %s24, 1
          %p281 = scmp.lt.s32.totalorder %s25, 0
          %s282 = scalar_select %p281, %s25, 0
          %s283 = sadd.s32 %s282, %s280
          %s284 = smul.addr %s283, 8
          %s285 = scalar_lea.vmem %s1, %s284
        $region24: #{track_query_fused.1} parent=15 // pred_fallthru
          _
        // Predicated region
        $region25: #{track_query_fused.1} parent=15 // pred_check
          %p286 = pneg %p105
        $region26: #{track_query_fused.1} parent=15 // pred_check_branch
          %288 = sbr.rel (%p286) target = $region28
        $region27: #{track_query_fused.1} parent=15 // pred_region
          %p289 = scmp.lt.s32.totalorder %s24, 1
          %s290 = scalar_select %p289, %s24, 1
          %s291 = smul.addr %s290, 2
          %s292 = scalar_lea.vmem %s2, %s291
        $region28: #{track_query_fused.1} parent=15 // pred_fallthru
          _
        // Predicated region
        $region29: #{track_query_fused.1} parent=15 // pred_check
          %p293 = pneg %p131
        $region30: #{track_query_fused.1} parent=15 // pred_check_branch
          %295 = sbr.rel (%p293) target = $region32
        $region31: #{track_query_fused.1} parent=15 // pred_region
          %p296 = scmp.lt.s32.totalorder %s24, 1
          %s297 = scalar_select %p296, %s24, 1
          %s298 = smul.addr %s297, 16
          %s299 = smul.addr %s298, 8
          %s300 = scalar_lea.vmem %s3, %s299
        $region32: #{track_query_fused.1} parent=15 // pred_fallthru
          _
        // Predicated region
        $region33: #{track_query_fused.1} parent=15 // pred_check
          %p301 = pneg %p157
        $region34: #{track_query_fused.1} parent=15 // pred_check_branch
          %303 = sbr.rel (%p301) target = $region36
        $region35: #{track_query_fused.1} parent=15 // pred_region
          %p304 = scmp.lt.s32.totalorder %s24, 1
          %s305 = scalar_select %p304, %s24, 1
          %s306 = smul.addr %s305, 16
          %s307 = smul.addr %s306, 8
          %s308 = scalar_lea.vmem %s4, %s307
        $region36: #{track_query_fused.1} parent=15 // pred_fallthru
          _
      $region16: #{track_query_fused.1} parent=5 // pred_fallthru
        _
      %p309 = scmp.le.s32.totalorder 1, %s17
      %p310 = scmp.lt.s32.totalorder %s17, 3
      %p311 = pnand %p309, %p310
      %p312 = pneg %p311
      // Predicated region
      $region37: #{track_query_fused.1} parent=5 // pred_check
        _
      $region38: #{track_query_fused.1} parent=5 // pred_check_branch
        %314 = sbr.rel (%p311) target = $region40
      $region39: #{track_query_fused.1} parent=5 // pred_region
        %s315 = ssub.s32 %s17, 1
        %p316 = scmp.lt.s32.totalorder %s26, 1
        %s317 = scalar_select %p316, %s26, 1
        %p318 = scmp.lt.s32.totalorder %s27, 0
        %s319 = scalar_select %p318, %s27, 0
        %s320 = sadd.s32 %s319, %s317
        %s321 = smul.addr %s320, 8
        %s322 = scalar_lea.vmem %s0, %s321
        %p323 = pneg %p57
        %p324 = pneg %p54
        %p325 = scmp.lt.s32.totalorder %s26, 1
        %s326 = scalar_select %p325, %s26, 1
        %p327 = scmp.lt.s32.totalorder %s27, 0
        %s328 = scalar_select %p327, %s27, 0
        %s329 = sadd.s32 %s328, %s326
        %s330 = smul.addr %s329, 8
        %s331 = scalar_lea.vmem %s1, %s330
        %p332 = pneg %p85
        %p333 = pneg %p82
        %p334 = scmp.lt.s32.totalorder %s26, 1
        %s335 = scalar_select %p334, %s26, 1
        %s336 = smul.addr %s335, 2
        %s337 = scalar_lea.vmem %s2, %s336
        %p338 = pneg %p111
        %p339 = pneg %p108
        %p340 = scmp.lt.s32.totalorder %s26, 1
        %s341 = scalar_select %p340, %s26, 1
        %s342 = smul.addr %s341, 16
        %s343 = smul.addr %s342, 8
        %s344 = scalar_lea.vmem %s3, %s343
        %p345 = pneg %p137
        %p346 = pneg %p134
        %p347 = scmp.lt.s32.totalorder %s26, 1
        %s348 = scalar_select %p347, %s26, 1
        %s349 = smul.addr %s348, 16
        %s350 = smul.addr %s349, 8
        %s351 = scalar_lea.vmem %s4, %s350
        %p352 = pneg %p163
        %p353 = pneg %p160
        %p354 = pneg %p191
        %p355 = pneg %p188
        %s356 = sand.u32 %s178, 1
        %s357 = scalar_lea.sflag [#allocation3], %s356
        %s358 = sand.u32 %s178, 1
        %s359 = smul.addr %s358, 8
        %s360 = scalar_lea.vmem [#allocation2], %s359
        %p361 = pneg %p219
        %p362 = pneg %p216
        %p363 = scmp.lt.s32.totalorder %s26, 1
        %s364 = scalar_select %p363, %s26, 1
        %p365 = scmp.lt.s32.totalorder %s27, 0
        %s366 = scalar_select %p365, %s27, 0
        %s367 = sadd.s32 %s366, %s364
        %s368 = smul.addr %s367, 8
        %s369 = scalar_lea.vmem %s6, %s368
        %p370 = pneg %p247
        %p371 = pneg %p244
        %p372 = scmp.lt.s32.totalorder %s26, 1
        %s373 = scalar_select %p372, %s26, 1
        %p374 = scmp.lt.s32.totalorder %s27, 0
        %s375 = scalar_select %p374, %s27, 0
        %s376 = sadd.s32 %s375, %s373
        %s377 = smul.addr %s376, 8
        %s378 = scalar_lea.vmem %s7, %s377
        %p379 = scmp.lt.s32.totalorder %s26, 1
        %s380 = scalar_select %p379, %s26, 1
        %p381 = scmp.lt.s32.totalorder %s27, 0
        %s382 = scalar_select %p381, %s27, 0
        %s383 = sadd.s32 %s382, %s380
        %s384 = smul.addr %s383, 8
        %s385 = scalar_lea.vmem %s0, %s384
        %p386 = scmp.lt.s32.totalorder %s26, 1
        %s387 = scalar_select %p386, %s26, 1
        %p388 = scmp.lt.s32.totalorder %s27, 0
        %s389 = scalar_select %p388, %s27, 0
        %s390 = sadd.s32 %s389, %s387
        %s391 = smul.addr %s390, 8
        %s392 = scalar_lea.vmem %s1, %s391
        %p393 = scmp.lt.s32.totalorder %s26, 1
        %s394 = scalar_select %p393, %s26, 1
        %s395 = smul.addr %s394, 2
        %s396 = scalar_lea.vmem %s2, %s395
        %p397 = scmp.lt.s32.totalorder %s26, 1
        %s398 = scalar_select %p397, %s26, 1
        %s399 = smul.addr %s398, 16
        %s400 = smul.addr %s399, 8
        %s401 = scalar_lea.vmem %s3, %s400
        %p402 = scmp.lt.s32.totalorder %s26, 1
        %s403 = scalar_select %p402, %s26, 1
        %s404 = smul.addr %s403, 16
        %s405 = smul.addr %s404, 8
        %s406 = scalar_lea.vmem %s4, %s405
        %p407 = scmp.lt.s32.totalorder %s26, 1
        %s408 = scalar_select %p407, %s26, 1
        %p409 = scmp.lt.s32.totalorder %s27, 0
        %s410 = scalar_select %p409, %s27, 0
        %s411 = sadd.s32 %s410, %s408
        %s412 = smul.addr %s411, 8
        %s413 = scalar_lea.vmem %s6, %s412
        %p414 = scmp.lt.s32.totalorder %s26, 1
        %s415 = scalar_select %p414, %s26, 1
        %p416 = scmp.lt.s32.totalorder %s27, 0
        %s417 = scalar_select %p416, %s27, 0
        %s418 = sadd.s32 %s417, %s415
        %s419 = smul.addr %s418, 8
        %s420 = scalar_lea.vmem %s7, %s419
        %v421 = vld [vmem:[%s385] sm:$0xff]
        %v422 = vld [vmem:[%s392] sm:$0xff]
        %v423 = vld [vmem:[%s396] sm:$0x1]
        %v424 = vld [vmem:[%s396 + $0x1] sm:$0x1]
        %v425 = vlaneseq
        %v426 = vand.u32 %v425, 127
        %427 = vset.pattern.permute.xlu0 0
        %428 = vperm.xlu0 %427, %v421
        %v429 = vpop.permute.xlu0 %428
        %vm430 = vcmp.eq.s32.totalorder %v429, %v426
        %vm431 = vcmp.lt.s32.totalorder %v426, 8
        %vm432 = vmand %vm430, %vm431
        %v433 = vlaneseq
        %v434 = vshrl.u32 %v433, 7
        %v435 = vsub.s32 0, %v434
        %v436 = vrot.slane %v423, %v435
        %v437 = vsel %vm432, %v436, 2147483647
        %v438 = vand.u32 %v437, 65535
        %v439 = vshra.s32 %v437, 16
        %v440 = vcvt.s32.f32 %v438
        %v441 = vcvt.s32.f32 %v439
        %442 = vmin.xlane.f32.xlu0 %v441
        %v443 = vpop.xlane.xlu0 %442
        %vm444 = vcmp.eq.f32.partialorder %v441, %v443
        %v445 = vsel %vm444, %v440, inf
        %446 = vmin.xlane.f32.xlu0 %v445
        %v447 = vpop.xlane.xlu0 %446
        %v448 = vcvt.f32.s32 %v447
        %v449 = vcvt.f32.s32 %v443
        %v450 = vshll.u32 %v449, 16
        %v451 = vadd.s32 %v450, %v448
        %v452 = vlaneseq
        %v453 = vshrl.u32 %v452, 7
        %v454 = vsub.s32 0, %v453
        %v455 = vrot.slane %v424, %v454
        %vm456 = vcmp.eq.s32.totalorder %v455, %v451
        %vm457 = vmand %vm456, %vm431
        %v458 = vsel %vm457, %v426, 8
        %v459 = vand.u32 %v458, 65535
        %v460 = vshra.s32 %v458, 16
        %v461 = vcvt.s32.f32 %v459
        %v462 = vcvt.s32.f32 %v460
        %463 = vmin.xlane.f32.xlu0 %v462
        %v464 = vpop.xlane.xlu0 %463
        %vm465 = vcmp.eq.f32.partialorder %v462, %v464
        %v466 = vsel %vm465, %v461, inf
        %467 = vmin.xlane.f32.xlu0 %v466
        %v468 = vpop.xlane.xlu0 %467
        %v469 = vcvt.f32.s32 %v468
        %v470 = vcvt.f32.s32 %v464
        %v471 = vshll.u32 %v470, 16
        %v472 = vadd.s32 %v471, %v469
        %vm473 = vcmp.lt.s32.totalorder %v472, 8
        %v474 = vsel %vm473, %v472, 4294967295
        %475 = vst [vmem:[%s420] sm:$0xff] %v474
        %476 = vset.pattern.permute.xlu0 0
        %477 = vperm.xlu0 %476, %v422
        %v478 = vpop.permute.xlu0 %477
        %vm479 = vcmp.eq.s32.totalorder %v478, %v426
        %v480 = vsel %vm479, 1, 0
        %v481 = vcvt.s32.f32 %v480
        %v482 = vld [vmem:[%s401] sm:$0xff]
        %v483 = vld [vmem:[%s401 + $0x8] sm:$0xff]
        %v484 = vld [vmem:[%s401 + $0x10] sm:$0xff]
        %v485 = vld [vmem:[%s401 + $0x18] sm:$0xff]
        %v486 = vld [vmem:[%s401 + $0x20] sm:$0xff]
        %v487 = vld [vmem:[%s401 + $0x28] sm:$0xff]
        %v488 = vld [vmem:[%s401 + $0x30] sm:$0xff]
        %v489 = vld [vmem:[%s401 + $0x38] sm:$0xff]
        %v490 = vld [vmem:[%s401 + $0x40] sm:$0xff]
        %v491 = vld [vmem:[%s401 + $0x48] sm:$0xff]
        %v492 = vld [vmem:[%s401 + $0x50] sm:$0xff]
        %v493 = vld [vmem:[%s401 + $0x58] sm:$0xff]
        %v494 = vld [vmem:[%s401 + $0x60] sm:$0xff]
        %v495 = vld [vmem:[%s401 + $0x68] sm:$0xff]
        %v496 = vld [vmem:[%s401 + $0x70] sm:$0xff]
        %v497 = vld [vmem:[%s401 + $0x78] sm:$0xff]
        %498 = vmatprep.subr.mxu0 0.0
        %499 = vmatpush1.msra.mxu0 %v482
        %500 = vmatprep.subr.mxu0 0.0
        %501 = vmatpush1.msra.mxu0 %v483
        %502 = vmatprep.subr.mxu0 0.0
        %503 = vmatpush1.msra.mxu0 %v484
        %504 = vmatprep.subr.mxu0 0.0
        %505 = vmatpush1.msra.mxu0 %v485
        %506 = vmatprep.subr.mxu0 0.0
        %507 = vmatpush1.msra.mxu0 %v486
        %508 = vmatprep.subr.mxu0 0.0
        %509 = vmatpush1.msra.mxu0 %v487
        %510 = vmatprep.subr.mxu0 0.0
        %511 = vmatpush1.msra.mxu0 %v488
        %512 = vmatprep.subr.mxu0 0.0
        %513 = vmatpush1.msra.mxu0 %v489
        %514 = vmatprep.subr.mxu0 0.0
        %515 = vmatpush1.msra.mxu0 %v490
        %516 = vmatprep.subr.mxu0 0.0
        %517 = vmatpush1.msra.mxu0 %v491
        %518 = vmatprep.subr.mxu0 0.0
        %519 = vmatpush1.msra.mxu0 %v492
        %520 = vmatprep.subr.mxu0 0.0
        %521 = vmatpush1.msra.mxu0 %v493
        %522 = vmatprep.subr.mxu0 0.0
        %523 = vmatpush1.msra.mxu0 %v494
        %524 = vmatprep.subr.mxu0 0.0
        %525 = vmatpush1.msra.mxu0 %v495
        %526 = vmatprep.subr.mxu0 0.0
        %527 = vmatpush1.msra.mxu0 %v496
        %528 = vmatprep.subr.mxu0 0.0
        %529 = vmatpush1.msra.mxu0 %v497
        %530 = vmatprep.subr.mxu0 0.0
        %531 = vmatpush1.msra.mxu0 0.0
        %532 = vmatprep.subr.mxu0 0.0
        %533 = vmatpush1.msra.mxu0 0.0
        %534 = vmatprep.subr.mxu0 0.0
        %535 = vmatpush1.msra.mxu0 0.0
        %536 = vmatprep.subr.mxu0 0.0
        %537 = vmatpush1.msra.mxu0 0.0
        %538 = vmatprep.subr.mxu0 0.0
        %539 = vmatpush1.msra.mxu0 0.0
        %540 = vmatprep.subr.mxu0 0.0
        %541 = vmatpush1.msra.mxu0 0.0
        %542 = vmatprep.subr.mxu0 0.0
        %543 = vmatpush1.msra.mxu0 0.0
        %544 = vmatprep.subr.mxu0 0.0
        %545 = vmatpush1.msra.mxu0 0.0
        %546 = vmatprep.subr.mxu0 0.0
        %547 = vmatpush1.msra.mxu0 0.0
        %548 = vmatprep.subr.mxu0 0.0
        %549 = vmatpush1.msra.mxu0 0.0
        %550 = vmatprep.subr.mxu0 0.0
        %551 = vmatpush1.msra.mxu0 0.0
        %552 = vmatprep.subr.mxu0 0.0
        %553 = vmatpush1.msra.mxu0 0.0
        %554 = vmatprep.subr.mxu0 0.0
        %555 = vmatpush1.msra.mxu0 0.0
        %556 = vmatprep.subr.mxu0 0.0
        %557 = vmatpush1.msra.mxu0 0.0
        %558 = vmatprep.subr.mxu0 0.0
        %559 = vmatpush1.msra.mxu0 0.0
        %560 = vmatprep.subr.mxu0 0.0
        %561 = vmatpush1.msra.mxu0 0.0
        %562 = vmatprep.mubr.f32.mxu0 0.0
        %563 = vmatmul.mubr.f32.gmra.mrb[0].mxu0 %v481
        %v564 = vpop.f32.mrb[0].mxu0
        %v565 = vadd.f32 0.0, %v564
        %v566 = vpop.f32.mrb[0].mxu0
        %567 = vdwg.mxu0
        %vm568 = vcmask 261120
        %569 = vst.msk [vmem:[%s360] sm:$0xff] %vm568, %v565
        %v570 = vld [vmem:[%s406] sm:$0xff]
        %v571 = vld [vmem:[%s406 + $0x8] sm:$0xff]
        %v572 = vld [vmem:[%s406 + $0x10] sm:$0xff]
        %v573 = vld [vmem:[%s406 + $0x18] sm:$0xff]
        %v574 = vld [vmem:[%s406 + $0x20] sm:$0xff]
        %v575 = vld [vmem:[%s406 + $0x28] sm:$0xff]
        %v576 = vld [vmem:[%s406 + $0x30] sm:$0xff]
        %v577 = vld [vmem:[%s406 + $0x38] sm:$0xff]
        %v578 = vld [vmem:[%s406 + $0x40] sm:$0xff]
        %v579 = vld [vmem:[%s406 + $0x48] sm:$0xff]
        %v580 = vld [vmem:[%s406 + $0x50] sm:$0xff]
        %v581 = vld [vmem:[%s406 + $0x58] sm:$0xff]
        %v582 = vld [vmem:[%s406 + $0x60] sm:$0xff]
        %v583 = vld [vmem:[%s406 + $0x68] sm:$0xff]
        %v584 = vld [vmem:[%s406 + $0x70] sm:$0xff]
        %v585 = vld [vmem:[%s406 + $0x78] sm:$0xff]
        %586 = vmatprep.subr.mxu0 0.0
        %587 = vmatpush1.msra.mxu0 %v570
        %588 = vmatprep.subr.mxu0 0.0
        %589 = vmatpush1.msra.mxu0 %v571
        %590 = vmatprep.subr.mxu0 0.0
        %591 = vmatpush1.msra.mxu0 %v572
        %592 = vmatprep.subr.mxu0 0.0
        %593 = vmatpush1.msra.mxu0 %v573
        %594 = vmatprep.subr.mxu0 0.0
        %595 = vmatpush1.msra.mxu0 %v574
        %596 = vmatprep.subr.mxu0 0.0
        %597 = vmatpush1.msra.mxu0 %v575
        %598 = vmatprep.subr.mxu0 0.0
        %599 = vmatpush1.msra.mxu0 %v576
        %600 = vmatprep.subr.mxu0 0.0
        %601 = vmatpush1.msra.mxu0 %v577
        %602 = vmatprep.subr.mxu0 0.0
        %603 = vmatpush1.msra.mxu0 %v578
        %604 = vmatprep.subr.mxu0 0.0
        %605 = vmatpush1.msra.mxu0 %v579
        %606 = vmatprep.subr.mxu0 0.0
        %607 = vmatpush1.msra.mxu0 %v580
        %608 = vmatprep.subr.mxu0 0.0
        %609 = vmatpush1.msra.mxu0 %v581
        %610 = vmatprep.subr.mxu0 0.0
        %611 = vmatpush1.msra.mxu0 %v582
        %612 = vmatprep.subr.mxu0 0.0
        %613 = vmatpush1.msra.mxu0 %v583
        %614 = vmatprep.subr.mxu0 0.0
        %615 = vmatpush1.msra.mxu0 %v584
        %616 = vmatprep.subr.mxu0 0.0
        %617 = vmatpush1.msra.mxu0 %v585
        %618 = vmatprep.subr.mxu0 0.0
        %619 = vmatpush1.msra.mxu0 0.0
        %620 = vmatprep.subr.mxu0 0.0
        %621 = vmatpush1.msra.mxu0 0.0
        %622 = vmatprep.subr.mxu0 0.0
        %623 = vmatpush1.msra.mxu0 0.0
        %624 = vmatprep.subr.mxu0 0.0
        %625 = vmatpush1.msra.mxu0 0.0
        %626 = vmatprep.subr.mxu0 0.0
        %627 = vmatpush1.msra.mxu0 0.0
        %628 = vmatprep.subr.mxu0 0.0
        %629 = vmatpush1.msra.mxu0 0.0
        %630 = vmatprep.subr.mxu0 0.0
        %631 = vmatpush1.msra.mxu0 0.0
        %632 = vmatprep.subr.mxu0 0.0
        %633 = vmatpush1.msra.mxu0 0.0
        %634 = vmatprep.subr.mxu0 0.0
        %635 = vmatpush1.msra.mxu0 0.0
        %636 = vmatprep.subr.mxu0 0.0
        %637 = vmatpush1.msra.mxu0 0.0
        %638 = vmatprep.subr.mxu0 0.0
        %639 = vmatpush1.msra.mxu0 0.0
        %640 = vmatprep.subr.mxu0 0.0
        %641 = vmatpush1.msra.mxu0 0.0
        %642 = vmatprep.subr.mxu0 0.0
        %643 = vmatpush1.msra.mxu0 0.0
        %644 = vmatprep.subr.mxu0 0.0
        %645 = vmatpush1.msra.mxu0 0.0
        %646 = vmatprep.subr.mxu0 0.0
        %647 = vmatpush1.msra.mxu0 0.0
        %648 = vmatprep.subr.mxu0 0.0
        %649 = vmatpush1.msra.mxu0 0.0
        %650 = vmatprep.mubr.f32.mxu0 0.0
        %651 = vmatmul.mubr.f32.gmra.mrb[0].mxu0 %v481
        %v652 = vpop.f32.mrb[0].mxu0
        %v653 = vadd.f32 0.0, %v652
        %v654 = vpop.f32.mrb[0].mxu0
        %655 = vdwg.mxu0
        %656 = vst [vmem:[%s413] sm:$0xff] %v653
        %s657 = sand.u32 %s178, 1
        %s658 = scalar_lea.sflag [#allocation3], %s657
        %s659 = sand.u32 %s178, 1
        %s660 = smul.addr %s659, 8
        %s661 = scalar_lea.vmem [#allocation2], %s660
        %p662 = scmp.lt.s32.totalorder %s26, 1
        %s663 = scalar_select %p662, %s26, 1
        %p664 = scmp.lt.s32.totalorder %s27, 0
        %s665 = scalar_select %p664, %s27, 0
        %s666 = sadd.s32 %s665, %s663
        %s667 = smul.addr %s666, 8
        %s668 = scalar_lea.vmem %s6, %s667
        %p669 = scmp.lt.s32.totalorder %s26, 1
        %s670 = scalar_select %p669, %s26, 1
        %p671 = scmp.lt.s32.totalorder %s27, 0
        %s672 = scalar_select %p671, %s27, 0
        %s673 = sadd.s32 %s672, %s670
        %s674 = smul.addr %s673, 8
        %s675 = scalar_lea.vmem %s7, %s674
        // Predicated region
        $region41: #{track_query_fused.1} parent=39 // pred_check
          %p676 = pneg %p188
        $region42: #{track_query_fused.1} parent=39 // pred_check_branch
          %678 = sbr.rel (%p676) target = $region44
        $region43: #{track_query_fused.1} parent=39 // pred_region
          %s680 = ssub.s32 128, 128
          %681 = vsyncadd %s658, %s680
          %s682 = sadd.s32 %s27, %s26
          %s683 = smul.addr %s682, 128
          %s684 = scalar_lea.hbm %s5, %s683
          %s686 = sshll.u32 %s661, 4
          %s687 = int_to_ptr.vmem [resolvable:$true] %s686
          %689 = dma.vmem_to_hbm [thread:$0]  %s687, 128, %s684, %s658
        $region44: #{track_query_fused.1} parent=39 // pred_fallthru
          _
        // Predicated region
        $region45: #{track_query_fused.1} parent=39 // pred_check
          %p690 = pneg %p216
        $region46: #{track_query_fused.1} parent=39 // pred_check_branch
          %692 = sbr.rel (%p690) target = $region48
        $region47: #{track_query_fused.1} parent=39 // pred_region
          _
        $region48: #{track_query_fused.1} parent=39 // pred_fallthru
          _
        // Predicated region
        $region49: #{track_query_fused.1} parent=39 // pred_check
          %p693 = pneg %p244
        $region50: #{track_query_fused.1} parent=39 // pred_check_branch
          %695 = sbr.rel (%p693) target = $region52
        $region51: #{track_query_fused.1} parent=39 // pred_region
          _
        $region52: #{track_query_fused.1} parent=39 // pred_fallthru
          _
      $region40: #{track_query_fused.1} parent=5 // pred_fallthru
        _
      %p696 = scmp.le.s32.totalorder 2, %s17
      // Predicated region
      $region53: #{track_query_fused.1} parent=5 // pred_check
        %p697 = pneg %p696
      $region54: #{track_query_fused.1} parent=5 // pred_check_branch
        %699 = sbr.rel (%p697) target = $region56
      $region55: #{track_query_fused.1} parent=5 // pred_region
        %s700 = ssub.s32 %s17, 2
        // Predicated region
        $region57: #{track_query_fused.1} parent=55 // pred_check
          %p701 = pneg %p194
        $region58: #{track_query_fused.1} parent=55 // pred_check_branch
          %703 = sbr.rel (%p701) target = $region60
        $region59: #{track_query_fused.1} parent=55 // pred_region
          %s704 = sand.u32 %s179, 1
          %s705 = scalar_lea.sflag [#allocation3], %s704
          %s706 = sand.u32 %s179, 1
          %s707 = smul.addr %s706, 8
          %s708 = scalar_lea.vmem [#allocation2], %s707
          %709 = dma.done %s705, 128
        $region60: #{track_query_fused.1} parent=55 // pred_fallthru
          _
        // Predicated region
        $region61: #{track_query_fused.1} parent=55 // pred_check
          %p710 = pneg %p222
        $region62: #{track_query_fused.1} parent=55 // pred_check_branch
          %712 = sbr.rel (%p710) target = $region64
        $region63: #{track_query_fused.1} parent=55 // pred_region
          %p713 = scmp.lt.s32.totalorder %s28, 1
          %s714 = scalar_select %p713, %s28, 1
          %p715 = scmp.lt.s32.totalorder %s29, 0
          %s716 = scalar_select %p715, %s29, 0
          %s717 = sadd.s32 %s716, %s714
          %s718 = smul.addr %s717, 8
          %s719 = scalar_lea.vmem %s6, %s718
        $region64: #{track_query_fused.1} parent=55 // pred_fallthru
          _
        // Predicated region
        $region65: #{track_query_fused.1} parent=55 // pred_check
          %p720 = pneg %p250
        $region66: #{track_query_fused.1} parent=55 // pred_check_branch
          %722 = sbr.rel (%p720) target = $region68
        $region67: #{track_query_fused.1} parent=55 // pred_region
          %p723 = scmp.lt.s32.totalorder %s28, 1
          %s724 = scalar_select %p723, %s28, 1
          %p725 = scmp.lt.s32.totalorder %s29, 0
          %s726 = scalar_select %p725, %s29, 0
          %s727 = sadd.s32 %s726, %s724
          %s728 = smul.addr %s727, 8
          %s729 = scalar_lea.vmem %s7, %s728
        $region68: #{track_query_fused.1} parent=55 // pred_fallthru
          _
      $region56: #{track_query_fused.1} parent=5 // pred_fallthru
        _
    $region6: #{track_query_fused.1} parent=1 // loop_footer
      %s21 = sadd.s32 1, %s17
    $region7: #{track_query_fused.1} parent=1 // loop_footer_branch
      %16 = sbr.rel target = $region3
    $region8: #{track_query_fused.1} parent=1 // loop_exit
      _
    %730 = vsyncpa [#allocation3], 1
    %s731 = scalar_lea.sflag [#allocation3], 1
    %732 = vsyncpa %s731, 1

</llo_original>
